<compile_context>
chip_gen: v5e
topology: v5e:2x2
jax: 0.10.0
libtpu: 0.0.40
codegen_flags: <defaults>
</compile_context>

<pallas_src>
import functools
from typing import NamedTuple, Tuple

import jax
import jax.numpy as jnp
from jax.experimental import pallas as pl
from jax.experimental.pallas import tpu as pltpu


class SparseConvTensor(NamedTuple):
    """Minimal JAX stand-in for spconv.SparseConvTensor (2D conv layout)."""
    features: jax.Array            # [N, C]  dense features of active voxels
    indices: jax.Array             # [N, 3]  int32 (batch, y, x)
    spatial_shape: Tuple[int, int]
    batch_size: int


# ---------------------------------------------------------------------------
# Tiling helpers
# ---------------------------------------------------------------------------
def _round_up(n: int, m: int) -> int:
    return -(-n // m) * m


def _row_tile(rows: int, max_tile: int = 1024) -> int:
    """Row tile: multiple of 16 (bf16-friendly), <= max_tile, and >= 2 grid
    steps when possible so the 'parallel' axis can shard across v7x's 2 TCs
    (the extra step is ~0.35us, negligible on 1-TC v5e/v6e)."""
    rows16 = _round_up(max(rows, 1), 16)
    if rows16 >= 2 * max_tile:
        return max_tile
    half = _round_up(-(-rows16 // 2), 16)
    return max(16, min(half, rows16))


# ---------------------------------------------------------------------------
# Kernel 1: fused (all branches / all offsets) gathered conv = one dot + bias
# ---------------------------------------------------------------------------
def _matmul_bias_kernel(g_ref, w_ref, b_ref, o_ref):
    # g: [tile, Kd] bf16, w: [Kd, Cp] bf16 (VMEM-resident), b: [1, Cp] f32.
    o_ref[...] = (jnp.dot(g_ref[...], w_ref[...],
                          preferred_element_type=jnp.float32)
                  + b_ref[...]).astype(o_ref.dtype)


def _matmul_bias(g, w, b, *, tile):
    n_pad, kd = g.shape
    cp = w.shape[1]
    return pl.pallas_call(
        _matmul_bias_kernel,
        out_shape=jax.ShapeDtypeStruct((n_pad, cp), jnp.float32),
        grid=(n_pad // tile,),
        in_specs=[
            pl.BlockSpec((tile, kd), lambda i: (i, 0)),
            pl.BlockSpec((kd, cp), lambda i: (0, 0)),   # weight VMEM-resident
            pl.BlockSpec((1, cp), lambda i: (0, 0)),    # bias VMEM-resident
        ],
        out_specs=pl.BlockSpec((tile, cp), lambda i: (i, 0)),
        compiler_params=pltpu.CompilerParams(
            dimension_semantics=("parallel",)),
    )(g, w, b)


def _matmul_bias_ref(g, w, b, *, tile):
    del tile
    return jnp.dot(g.astype(jnp.float32), w.astype(jnp.float32),
                   precision=jax.lax.Precision.HIGHEST) + b


# ---------------------------------------------------------------------------
# Kernel 2: fused InstanceNorm-apply + ReLU + channel-concat ("join")
# ---------------------------------------------------------------------------
def _norm_relu_join_kernel(x_ref, feat_ref, ins_ref, scale_ref, shift_ref,
                           o_ref, *, n_valid, c_in, c_br, tile):
    # x:     [tile, Cp]   f32  branch conv outputs (cols >= c_br are zero)
    # feat:  [tile, Cin]  bf16 pass-through input features
    # ins:   [tile, 1]    i32  instance id per voxel
    # scale/shift: [NIpad, Cp] f32 per-(instance, channel), VMEM-resident
    # o:     [tile, Cin + c_br] bf16  joined = [input | relu(norm(branches))]
    ni_pad = scale_ref.shape[0]
    rows = (pl.program_id(0) * tile
            + jax.lax.broadcasted_iota(jnp.int32, (tile, 1), 0))
    valid = rows < n_valid                                       # zero pad rows

    onehot = (ins_ref[...] ==
              jax.lax.broadcasted_iota(jnp.int32, (tile, ni_pad), 1)
              ).astype(jnp.float32)                              # [tile, NIpad]
    scale = jnp.dot(onehot, scale_ref[...],
                    preferred_element_type=jnp.float32)          # [tile, Cp]
    shift = jnp.dot(onehot, shift_ref[...],
                    preferred_element_type=jnp.float32)

    normed = jnp.maximum(x_ref[...] * scale - shift, 0.0)        # norm + ReLU
    feat = feat_ref[...].astype(jnp.float32)

    o_ref[:, :c_in] = jnp.where(valid, feat, 0.0).astype(o_ref.dtype)
    o_ref[:, c_in:] = jnp.where(valid, normed[:, :c_br], 0.0).astype(o_ref.dtype)


def _norm_relu_join(conv_all, feats_pad, ins_col, scale_p, shift_p, *,
                    n_valid, c_in, c_br, tile):
    n_pad, c_pad = conv_all.shape
    ni_pad = scale_p.shape[0]
    c_join = c_in + c_br
    kern = functools.partial(_norm_relu_join_kernel, n_valid=n_valid,
                             c_in=c_in, c_br=c_br, tile=tile)
    return pl.pallas_call(
        kern,
        out_shape=jax.ShapeDtypeStruct((n_pad, c_join), jnp.bfloat16),
        grid=(n_pad // tile,),
        in_specs=[
            pl.BlockSpec((tile, c_pad), lambda i: (i, 0)),
            pl.BlockSpec((tile, c_in), lambda i: (i, 0)),
            pl.BlockSpec((tile, 1), lambda i: (i, 0)),
            pl.BlockSpec((ni_pad, c_pad), lambda i: (0, 0)),   # resident
            pl.BlockSpec((ni_pad, c_pad), lambda i: (0, 0)),   # resident
        ],
        out_specs=pl.BlockSpec((tile, c_join), lambda i: (i, 0)),
        compiler_params=pltpu.CompilerParams(
            dimension_semantics=("parallel",)),
    )(conv_all, feats_pad, ins_col, scale_p, shift_p)


def _norm_relu_join_ref(conv_all, feats_pad, ins_col, scale_p, shift_p, *,
                        n_valid, c_in, c_br, tile):
    del tile, c_in
    ids = ins_col[:, 0]
    normed = jnp.maximum(conv_all * scale_p[ids] - shift_p[ids], 0.0)[:, :c_br]
    joined = jnp.concatenate([feats_pad.astype(jnp.float32), normed], axis=1)
    valid = (jnp.arange(conv_all.shape[0]) < n_valid)[:, None]
    return jnp.where(valid, joined, 0.0).astype(jnp.bfloat16)


# ---------------------------------------------------------------------------
# Sparse bookkeeping (plain XLA ops -- tiny integer / reduction work)
# ---------------------------------------------------------------------------
def _per_instance_dilation(indices, ins, num_ins, spatial_shape, dilation_max):
    """d = max(1, ceil(max(h_ratio, w_ratio) * dilation_max)), per voxel."""
    h, w = spatial_shape
    y = indices[:, 1].astype(jnp.float32)
    x = indices[:, 2].astype(jnp.float32)
    ymin = jax.ops.segment_min(y, ins, num_segments=num_ins)
    ymax = jax.ops.segment_max(y, ins, num_segments=num_ins)
    xmin = jax.ops.segment_min(x, ins, num_segments=num_ins)
    xmax = jax.ops.segment_max(x, ins, num_segments=num_ins)
    ratio = jnp.maximum((ymax - ymin) / h, (xmax - xmin) / w)
    d = jnp.maximum(1.0, jnp.ceil(ratio * dilation_max)).astype(jnp.int32)
    return d[ins]


def _build_gather_map(indices, ins, spatial_shape, batch_size, ksize,
                      dilation_per_voxel, same_instance_only, sentinel):
    """[N, KK] row indices into the feature table; `sentinel` marks a missing
    neighbor and must point at a guaranteed-zero row of the gather source."""
    n = indices.shape[0]
    h, w = spatial_shape
    b, y, x = indices[:, 0], indices[:, 1], indices[:, 2]
    grid_row = jnp.full((batch_size, h, w), -1, jnp.int32)
    grid_row = grid_row.at[b, y, x].set(jnp.arange(n, dtype=jnp.int32))
    half = (ksize - 1) // 2
    cols = []
    for ki in range(ksize):
        for kj in range(ksize):
            ny = y + (ki - half) * dilation_per_voxel
            nx = x + (kj - half) * dilation_per_voxel
            inb = (ny >= 0) & (ny < h) & (nx >= 0) & (nx < w)
            nrow = grid_row[b, jnp.clip(ny, 0, h - 1), jnp.clip(nx, 0, w - 1)]
            valid = inb & (nrow >= 0)
            if same_instance_only:
                valid = valid & (ins[jnp.maximum(nrow, 0)] == ins)
            cols.append(jnp.where(valid, nrow, sentinel))
    return jnp.stack(cols, axis=1)                      # [N, KK]


def _instance_stats(feats, ins, num_ins):
    ones = jnp.ones((feats.shape[0],), feats.dtype)
    cnt = jnp.maximum(jax.ops.segment_sum(ones, ins, num_segments=num_ins), 1.0)
    cnt = cnt[:, None]
    mean = jax.ops.segment_sum(feats, ins, num_segments=num_ins) / cnt
    ex2 = jax.ops.segment_sum(feats * feats, ins, num_segments=num_ins) / cnt
    var = jnp.maximum(ex2 - mean * mean, 0.0)   # biased var, like InstanceNorm1d
    return mean, var


# ---------------------------------------------------------------------------
# Module forward: SubMConv2dInsDilateASPP
# ---------------------------------------------------------------------------
def subm_conv2d_ins_dilate_aspp(x: SparseConvTensor, ins_indices_batch,
                                num_ins: int, params, *, ksize: int = 3,
                                atrous_rates=(1, 3, 5), eps: float = 1e-5,
                                use_pallas: bool = True,
                                max_tile_rows: int = 1024) -> SparseConvTensor:
    conv_fn = _matmul_bias if use_pallas else _matmul_bias_ref
    join_fn = _norm_relu_join if use_pallas else _norm_relu_join_ref

    features, indices = x.features, x.indices
    spatial_shape, batch_size = x.spatial_shape, x.batch_size
    n, c_in = features.shape
    kk = ksize * ksize
    c_out = params["aspp1_w"].shape[-1]
    nb = len(atrous_rates)
    c_br = nb * c_out                      # concatenated branch width
    c_join = c_in + c_br                   # JoinTable width
    c_pad = _round_up(c_br, 128)           # lane-dense ASPP conv output width
    cf_pad = _round_up(c_out, 128)         # lane-dense fuse conv output width
    ni_pad = _round_up(num_ins, 8)

    tile = _row_tile(n + 1, max_tile_rows)
    n_pad = _round_up(n + 1, tile)         # >= 1 padded (zero) row guaranteed

    # ---- ASPP branches: gather maps with per-instance dilation -------------
    gmaps = []
    for rate in atrous_rates:
        d_vox = _per_instance_dilation(indices, ins_indices_batch, num_ins,
                                       spatial_shape, rate)
        gmaps.append(_build_gather_map(indices, ins_indices_batch,
                                       spatial_shape, batch_size, ksize, d_vox,
                                       same_instance_only=True, sentinel=n))
    gmap_aspp = jnp.concatenate(gmaps, axis=1)                     # [n, nb*kk]
    gmap_aspp = jnp.pad(gmap_aspp, ((0, n_pad - n), (0, 0)),
                        constant_values=n)                         # pad rows

    feats_src = jnp.concatenate(
        [features.astype(jnp.bfloat16), jnp.zeros((1, c_in), jnp.bfloat16)],
        axis=0)                                                    # row n = 0
    g_aspp = feats_src[gmap_aspp].reshape(n_pad, nb * kk * c_in)   # bf16

    # Block-diagonal combined weight, output padded to a lane multiple.
    w_all = jnp.zeros((nb * kk * c_in, c_pad), jnp.bfloat16)
    b_all = jnp.zeros((1, c_pad), jnp.float32)
    for bi in range(nb):
        wb = params[f"aspp{bi + 1}_w"].reshape(kk * c_in, c_out)
        w_all = w_all.at[bi * kk * c_in:(bi + 1) * kk * c_in,
                         bi * c_out:(bi + 1) * c_out].set(wb.astype(jnp.bfloat16))
        b_all = b_all.at[0, bi * c_out:(bi + 1) * c_out].set(
            params[f"aspp{bi + 1}_b"].astype(jnp.float32))

    conv_all = conv_fn(g_aspp, w_all, b_all, tile=tile)            # [n_pad, c_pad] f32

    # ---- per-(instance, channel) InstanceNorm statistics --------------------
    mean, var = _instance_stats(conv_all[:n, :c_br], ins_indices_batch, num_ins)
    scale = jax.lax.rsqrt(var + eps)
    shift = mean * scale
    scale_p = jnp.zeros((ni_pad, c_pad), jnp.float32).at[:num_ins, :c_br].set(scale)
    shift_p = jnp.zeros((ni_pad, c_pad), jnp.float32).at[:num_ins, :c_br].set(shift)

    feats_pad = jnp.zeros((n_pad, c_in), jnp.bfloat16).at[:n].set(
        features.astype(jnp.bfloat16))
    ins_col = jnp.zeros((n_pad, 1), jnp.int32).at[:n, 0].set(
        ins_indices_batch.astype(jnp.int32))

    # ---- fused norm + ReLU + JoinTable concat (bf16 joined, pad rows zero) --
    joined = join_fn(conv_all, feats_pad, ins_col, scale_p, shift_p,
                     n_valid=n, c_in=c_in, c_br=c_br, tile=tile)   # [n_pad, c_join]

    # ---- fuse conv: plain submanifold conv, dilation 1, over all voxels -----
    ones = jnp.ones((n,), jnp.int32)
    gmap_fuse = _build_gather_map(indices, ins_indices_batch, spatial_shape,
                                  batch_size, ksize, ones,
                                  same_instance_only=False,
                                  sentinel=n_pad - 1)              # zeroed pad row
    gmap_fuse = jnp.pad(gmap_fuse, ((0, n_pad - n), (0, 0)),
                        constant_values=n_pad - 1)
    g_fuse = joined[gmap_fuse].reshape(n_pad, kk * c_join)         # bf16

    w_fuse = jnp.zeros((kk * c_join, cf_pad), jnp.bfloat16).at[:, :c_out].set(
        params["fuse_w"].reshape(kk * c_join, c_out).astype(jnp.bfloat16))
    b_fuse = jnp.zeros((1, cf_pad), jnp.float32).at[0, :c_out].set(
        params["fuse_b"].astype(jnp.float32))

    out = conv_fn(g_fuse, w_fuse, b_fuse, tile=tile)               # [n_pad, cf_pad]
    return SparseConvTensor(out[:n, :c_out], indices, spatial_shape, batch_size)


# ---------------------------------------------------------------------------
# Demo / self-test
# ---------------------------------------------------------------------------
if __name__ == "__main__":
    B, H, W = 2, 32, 32
    C_IN, C_OUT, K = 32, 32, 3
    N, NUM_INS = 240, 3
    ATROUS = (1, 3, 5)

    key = jax.random.PRNGKey(0)
    keys = jax.random.split(key, 11)

    # Unique active voxel coordinates.
    flat = jax.random.permutation(keys[0], B * H * W)[:N]
    b = (flat // (H * W)).astype(jnp.int32)
    y = ((flat // W) % H).astype(jnp.int32)
    xx = (flat % W).astype(jnp.int32)
    indices = jnp.stack([b, y, xx], axis=1)

    ins_indices_batch = jax.random.randint(keys[1], (N,), 0, NUM_INS,
                                           dtype=jnp.int32)
    features = jax.random.normal(keys[2], (N, C_IN), dtype=jnp.float32)

    kk = K * K
    def mkw(k, cin):
        return 0.1 * jax.random.normal(k, (kk, cin, C_OUT), dtype=jnp.float32)
    def mkb(k):
        return 0.1 * jax.random.normal(k, (C_OUT,), dtype=jnp.float32)

    params = {
        "aspp1_w": mkw(keys[3], C_IN), "aspp1_b": mkb(keys[4]),
        "aspp2_w": mkw(keys[5], C_IN), "aspp2_b": mkb(keys[6]),
        "aspp3_w": mkw(keys[7], C_IN), "aspp3_b": mkb(keys[8]),
        "fuse_w": mkw(keys[9], C_IN + 3 * C_OUT), "fuse_b": mkb(keys[10]),
    }

    x = SparseConvTensor(features, indices, (H, W), B)

    out = subm_conv2d_ins_dilate_aspp(x, ins_indices_batch, NUM_INS, params,
                                      ksize=K, atrous_rates=ATROUS,
                                      use_pallas=True)
    jax.block_until_ready(out.features)

    # Pure-JAX reference with identical bf16 quantization of the gathered
    # features / weights (the bf16 MXU path is a documented deviation from the
    # f32 PyTorch conv, per the performance guidance).
    ref = subm_conv2d_ins_dilate_aspp(x, ins_indices_batch, NUM_INS, params,
                                      ksize=K, atrous_rates=ATROUS,
                                      use_pallas=False)

    assert out.features.shape == (N, C_OUT)
    assert jnp.array_equal(out.indices, indices)
    max_diff = float(jnp.max(jnp.abs(out.features - ref.features)))
    assert jnp.allclose(out.features, ref.features, rtol=1e-2, atol=1e-2), (
        "max abs diff:", max_diff)
    print("KERNEL_OK")
</pallas_src>

<mosaic_0001>
module attributes {stable_mosaic.version = 11 : i64} {
  func.func @_matmul_bias_kernel(%arg0: i32, %arg1: memref<128x864xbf16, #tpu.memory_space<vmem>>, %arg2: memref<864x128xbf16, #tpu.memory_space<vmem>>, %arg3: memref<1x128xf32, #tpu.memory_space<vmem>>, %arg4: memref<128x128xf32, #tpu.memory_space<vmem>>) attributes {dimension_semantics = [#tpu.dimension_semantics<parallel>], iteration_bounds = array<i64: 2>, scalar_prefetch = 0 : i64, scratch_operands = 0 : i64, tpu.core_type = #tpu.core_type<tc>, window_params = [{transform_indices = @transform_0, window_bounds = array<i64: 128, 864>}, {pipeline_mode = #tpu.pipeline_mode<synchronous>, transform_indices = @transform_1, window_bounds = array<i64: 864, 128>}, {pipeline_mode = #tpu.pipeline_mode<synchronous>, transform_indices = @transform_2, window_bounds = array<i64: 1, 128>}, {transform_indices = @transform_3, window_bounds = array<i64: 128, 128>}]} {
    %c0 = arith.constant 0 : index
    %c0_0 = arith.constant 0 : index
    %0 = vector.load %arg1[%c0, %c0_0] : memref<128x864xbf16, #tpu.memory_space<vmem>>, vector<128x864xbf16>
    %c0_1 = arith.constant 0 : index
    %c0_2 = arith.constant 0 : index
    %1 = vector.load %arg2[%c0_1, %c0_2] : memref<864x128xbf16, #tpu.memory_space<vmem>>, vector<864x128xbf16>
    %cst = arith.constant dense<0.000000e+00> : vector<128x128xf32>
    %2 = tpu.matmul %0, %1, %cst {dimension_numbers = #tpu.dot_dimension_numbers<[1], [0], [0], [1], [0, 0, 1, 1], [], []>} : vector<128x864xbf16>, vector<864x128xbf16>, vector<128x128xf32> -> vector<128x128xf32>
    %c0_3 = arith.constant 0 : index
    %c0_4 = arith.constant 0 : index
    %3 = vector.load %arg3[%c0_3, %c0_4] : memref<1x128xf32, #tpu.memory_space<vmem>>, vector<1x128xf32>
    %4 = vector.broadcast %3 : vector<1x128xf32> to vector<128x128xf32>
    %5 = arith.addf %2, %4 : vector<128x128xf32>
    %c0_5 = arith.constant 0 : index
    %c0_6 = arith.constant 0 : index
    %6 = vector.load %arg4[%c0_5, %c0_6] : memref<128x128xf32, #tpu.memory_space<vmem>>, vector<128x128xf32>
    tpu.vector_store %arg4[%c0_5, %c0_6], %5 {strides = array<i32>} : memref<128x128xf32, #tpu.memory_space<vmem>>, vector<128x128xf32>,
    return
  }
  func.func @transform_0(%arg0: i32) -> (i32, i32) {
    %c0_i32 = arith.constant 0 : i32
    %c0_i32_0 = arith.constant 0 : i32
    return %arg0, %c0_i32 : i32, i32
  }
  func.func @transform_1(%arg0: i32) -> (i32, i32) {
    %c0_i32 = arith.constant 0 : i32
    %c0_i32_0 = arith.constant 0 : i32
    %c0_i32_1 = arith.constant 0 : i32
    return %c0_i32, %c0_i32_0 : i32, i32
  }
  func.func @transform_2(%arg0: i32) -> (i32, i32) {
    %c0_i32 = arith.constant 0 : i32
    %c0_i32_0 = arith.constant 0 : i32
    %c0_i32_1 = arith.constant 0 : i32
    return %c0_i32, %c0_i32_0 : i32, i32
  }
  func.func @transform_3(%arg0: i32) -> (i32, i32) {
    %c0_i32 = arith.constant 0 : i32
    %c0_i32_0 = arith.constant 0 : i32
    return %arg0, %c0_i32 : i32, i32
  }
}

</mosaic_0001>

<llo_original>
// kernel: tpu_custom_call.1
$region0: #{tpu_custom_call.1}
  #allocation0 [shape = 'u32[]', space=smem, size = 0x4, offset = 0x4, fixed_abs, tag = 'smem constant byte address 0x4 - core index']
  #allocation1 [shape = 'u32[72,128]{1,0:T(1,128)}', space=vmem, size = 0x9000, scoped, tag = 'internal scratch']
  %s0 = inlined_call_operand.vmem [shape: bf16[256,864], index: 0, kind: input, shape index: {}]
  %s1 = inlined_call_operand.vmem [shape: bf16[864,128], index: 1, kind: input, shape index: {}]
  %s2 = inlined_call_operand.vmem [shape: f32[1,128], index: 2, kind: input, shape index: {}]
  %s3 = inlined_call_operand.hbm [shape: f32[256,128], index: 3, kind: output, shape index: {}]
  %s4 = sld [smem:[#allocation0]]
  $region45: #{tpu_custom_call.1} parent=0
    _
  %s6 = ssub.s32 1, %s4
  %s7 = scalar_select 0, %s6, %s4
  $region1: #{tpu_custom_call.1} parent=0
    #allocation2 [shape = 'u8[131072]{0}', space=vmem, size = 0x20000, scoped, tag = 'output window, operand 0']
    #allocation3 [shape = 's32[2]{0}', space=sflag, size = 0x8, scoped, tag = 'scoped memory for tpu_custom_call.1']
    %8 = vsyncpa [#allocation3], 0
    %s9 = scalar_lea.sflag [#allocation3], 1
    %10 = vsyncpa %s9, 0
    loop: start=0, step=1, limit=4
    $region2: #{tpu_custom_call.1} parent=1 // loop_pre_header
      _
    $region3: #{tpu_custom_call.1} parent=1 // loop_header
      %s12 = sphi 0, %s16
      %p13 = scmp.ge.s32.totalorder %s12, 4
      %s22 = sphi 0, %s24
      %s25 = sphi 0, %s22
      %s26 = sphi 0, %s25
      %s42 = sphi 0, %s26
      %s46 = sphi 0, %s46
      %s48 = sphi 0, %s46
      %s49 = sphi 0, %s48
      %s63 = sphi 0, %s49
      %s67 = sphi 0, %s67
      %s69 = sphi 0, %s67
      %s70 = sphi 0, %s69
      %s84 = sphi 0, %s70
      %s90 = sphi 0, %s92
      %s93 = sphi 0, %s90
      %s94 = sphi 0, %s93
      %s110 = sphi 0, %s94
    $region4: #{tpu_custom_call.1} parent=1 // loop_header_branch
      %15 = sbr.rel (%p13) target = $region8
    $region5: #{tpu_custom_call.1} parent=1 // loop_body
      %s17 = ssub.s32 %s12, 1
      %s18 = ssub.s32 %s12, 2
      %s19 = sadd.s32 %s12, 1
      %s20 = ssub.s32 %s12, %s19
      %p21 = scmp.eq.s32.totalorder %s20, 0
      %s23 = sadd.s32 %s22, 1
      %s24 = scalar_select %p21, %s22, %s23
      %p27 = pneg %p21
      %p28 = scmp.eq.s32.totalorder %s12, 1
      %p29 = por %p27, %p28
      %p30 = scmp.ne.s32.totalorder %s22, %s25
      %p31 = scmp.eq.s32.totalorder %s12, 0
      %p32 = por %p30, %p31
      %p33 = scmp.ne.s32.totalorder %s22, %s25
      %p34 = scmp.eq.s32.totalorder %s17, 1
      %p35 = por %p33, %p34
      %p36 = scmp.ne.s32.totalorder %s25, %s26
      %p37 = scmp.eq.s32.totalorder %s17, 0
      %p38 = por %p36, %p37
      %p39 = scmp.ne.s32.totalorder %s25, %s26
      %p40 = scmp.eq.s32.totalorder %s18, 1
      %p41 = por %p39, %p40
      %p43 = scmp.ne.s32.totalorder %s26, %s42
      %p44 = scmp.eq.s32.totalorder %s18, 0
      %p45 = por %p43, %p44
      %s47 = sadd.s32 %s46, 1
      %p50 = scmp.eq.s32.totalorder %s12, 1
      %p51 = scmp.ne.s32.totalorder %s46, %s48
      %p52 = scmp.eq.s32.totalorder %s12, 0
      %p53 = por %p51, %p52
      %p54 = scmp.ne.s32.totalorder %s46, %s48
      %p55 = scmp.eq.s32.totalorder %s17, 1
      %p56 = por %p54, %p55
      %p57 = scmp.ne.s32.totalorder %s48, %s49
      %p58 = scmp.eq.s32.totalorder %s17, 0
      %p59 = por %p57, %p58
      %p60 = scmp.ne.s32.totalorder %s48, %s49
      %p61 = scmp.eq.s32.totalorder %s18, 1
      %p62 = por %p60, %p61
      %p64 = scmp.ne.s32.totalorder %s49, %s63
      %p65 = scmp.eq.s32.totalorder %s18, 0
      %p66 = por %p64, %p65
      %s68 = sadd.s32 %s67, 1
      %p71 = scmp.eq.s32.totalorder %s12, 1
      %p72 = scmp.ne.s32.totalorder %s67, %s69
      %p73 = scmp.eq.s32.totalorder %s12, 0
      %p74 = por %p72, %p73
      %p75 = scmp.ne.s32.totalorder %s67, %s69
      %p76 = scmp.eq.s32.totalorder %s17, 1
      %p77 = por %p75, %p76
      %p78 = scmp.ne.s32.totalorder %s69, %s70
      %p79 = scmp.eq.s32.totalorder %s17, 0
      %p80 = por %p78, %p79
      %p81 = scmp.ne.s32.totalorder %s69, %s70
      %p82 = scmp.eq.s32.totalorder %s18, 1
      %p83 = por %p81, %p82
      %p85 = scmp.ne.s32.totalorder %s70, %s84
      %p86 = scmp.eq.s32.totalorder %s18, 0
      %p87 = por %p85, %p86
      %s88 = ssub.s32 %s12, %s19
      %p89 = scmp.eq.s32.totalorder %s88, 0
      %s91 = sadd.s32 %s90, 1
      %s92 = scalar_select %p89, %s90, %s91
      %p95 = pneg %p89
      %p96 = scmp.eq.s32.totalorder %s12, 1
      %p97 = por %p95, %p96
      %p98 = scmp.ne.s32.totalorder %s90, %s93
      %p99 = scmp.eq.s32.totalorder %s12, 0
      %p100 = por %p98, %p99
      %p101 = scmp.ne.s32.totalorder %s90, %s93
      %p102 = scmp.eq.s32.totalorder %s17, 1
      %p103 = por %p101, %p102
      %p104 = scmp.ne.s32.totalorder %s93, %s94
      %p105 = scmp.eq.s32.totalorder %s17, 0
      %p106 = por %p104, %p105
      %p107 = scmp.ne.s32.totalorder %s93, %s94
      %p108 = scmp.eq.s32.totalorder %s18, 1
      %p109 = por %p107, %p108
      %p111 = scmp.ne.s32.totalorder %s94, %s110
      %p112 = scmp.eq.s32.totalorder %s18, 0
      %p113 = por %p111, %p112
      %p114 = scmp.le.s32.totalorder 1, %s12
      %p115 = scmp.lt.s32.totalorder %s12, 3
      %p116 = pnand %p114, %p115
      %p117 = pneg %p116
      // Predicated region
      $region9: #{tpu_custom_call.1} parent=5 // pred_check
        _
      $region10: #{tpu_custom_call.1} parent=5 // pred_check_branch
        %119 = sbr.rel (%p116) target = $region12
      $region11: #{tpu_custom_call.1} parent=5 // pred_region
        %s120 = ssub.s32 %s12, 1
        // Predicated region
        $region13: #{tpu_custom_call.1} parent=11 // pred_check
          %p121 = pneg %p59
        $region14: #{tpu_custom_call.1} parent=11 // pred_check_branch
          %123 = sbr.rel (%p121) target = $region16
        $region15: #{tpu_custom_call.1} parent=11 // pred_region
          _
        $region16: #{tpu_custom_call.1} parent=11 // pred_fallthru
          _
        // Predicated region
        $region17: #{tpu_custom_call.1} parent=11 // pred_check
          %p124 = pneg %p80
        $region18: #{tpu_custom_call.1} parent=11 // pred_check_branch
          %126 = sbr.rel (%p124) target = $region20
        $region19: #{tpu_custom_call.1} parent=11 // pred_region
          _
        $region20: #{tpu_custom_call.1} parent=11 // pred_fallthru
          _
      $region12: #{tpu_custom_call.1} parent=5 // pred_fallthru
        _
      %p127 = scmp.lt.s32.totalorder %s12, 2
      // Predicated region
      $region21: #{tpu_custom_call.1} parent=5 // pred_check
        %p128 = pneg %p127
      $region22: #{tpu_custom_call.1} parent=5 // pred_check_branch
        %130 = sbr.rel (%p128) target = $region24
      $region23: #{tpu_custom_call.1} parent=5 // pred_region
        // Predicated region
        $region25: #{tpu_custom_call.1} parent=23 // pred_check
          %p131 = pneg %p32
        $region26: #{tpu_custom_call.1} parent=23 // pred_check_branch
          %133 = sbr.rel (%p131) target = $region28
        $region27: #{tpu_custom_call.1} parent=23 // pred_region
          %s134 = smul.u32 16, %s12
          %p135 = scmp.lt.s32.totalorder %s134, 31
          %s136 = scalar_select %p135, %s134, 31
          %s137 = smul.addr %s136, 7
          %s138 = smul.addr %s137, 4
          %s139 = scalar_lea.vmem %s0, %s138
          %s140 = smul.u32 16, %s12
        $region28: #{tpu_custom_call.1} parent=23 // pred_fallthru
          _
      $region24: #{tpu_custom_call.1} parent=5 // pred_fallthru
        _
      %p141 = scmp.le.s32.totalorder 1, %s12
      %p142 = scmp.lt.s32.totalorder %s12, 3
      %p143 = pnand %p141, %p142
      %p144 = pneg %p143
      // Predicated region
      $region29: #{tpu_custom_call.1} parent=5 // pred_check
        _
      $region30: #{tpu_custom_call.1} parent=5 // pred_check_branch
        %146 = sbr.rel (%p143) target = $region32
      $region31: #{tpu_custom_call.1} parent=5 // pred_region
        %s147 = ssub.s32 %s12, 1
        %s148 = smul.u32 16, %s17
        %p149 = scmp.lt.s32.totalorder %s148, 31
        %s150 = scalar_select %p149, %s148, 31
        %s151 = smul.addr %s150, 7
        %s152 = smul.addr %s151, 4
        %s153 = scalar_lea.vmem %s0, %s152
        %p154 = pneg %p38
        %p155 = pneg %p35
        %p156 = pneg %p59
        %p157 = pneg %p56
        %p158 = pneg %p80
        %p159 = pneg %p77
        %p160 = pneg %p106
        %p161 = pneg %p103
        %s162 = sand.u32 %s93, 1
        %s163 = scalar_lea.sflag [#allocation3], %s162
        %s164 = sand.u32 %s93, 1
        %s165 = smul.addr %s164, 128
        %s166 = scalar_lea.vmem [#allocation2], %s165
        %s167 = smul.u32 16, %s17
        %p168 = scmp.lt.s32.totalorder %s167, 31
        %s169 = scalar_select %p168, %s167, 31
        %s170 = smul.addr %s169, 7
        %s171 = smul.addr %s170, 4
        %s172 = scalar_lea.vmem %s0, %s171
        %s173 = smul.u32 16, %s17
        %s174 = smul.u32 16, %s17
        %v176 = vld [vmem:[%s172] sm:$0xff]
        %v177 = vld [vmem:[%s172 + $0x8] sm:$0xff]
        %v178 = vld [vmem:[%s172 + $0x10] sm:$0xff]
        %v179 = vld [vmem:[%s172 + $0x18] sm:$0xf]
        %v180 = vld [vmem:[%s172 + $0x1c] sm:$0xff]
        %v181 = vld [vmem:[%s172 + $0x24] sm:$0xff]
        %v182 = vld [vmem:[%s172 + $0x2c] sm:$0xff]
        %v183 = vld [vmem:[%s172 + $0x34] sm:$0xf]
        %v184 = vld [vmem:[%s172 + $0x38] sm:$0xff]
        %v185 = vld [vmem:[%s172 + $0x40] sm:$0xff]
        %v186 = vld [vmem:[%s172 + $0x48] sm:$0xff]
        %v187 = vld [vmem:[%s172 + $0x50] sm:$0xf]
        %v188 = vld [vmem:[%s172 + $0x54] sm:$0xff]
        %v189 = vld [vmem:[%s172 + $0x5c] sm:$0xff]
        %v190 = vld [vmem:[%s172 + $0x64] sm:$0xff]
        %v191 = vld [vmem:[%s172 + $0x6c] sm:$0xf]
        %v192 = vld [vmem:[%s172 + $0x70] sm:$0xff]
        %v193 = vld [vmem:[%s172 + $0x78] sm:$0xff]
        %v194 = vld [vmem:[%s172 + $0x80] sm:$0xff]
        %v195 = vld [vmem:[%s172 + $0x88] sm:$0xf]
        %v196 = vld [vmem:[%s172 + $0x8c] sm:$0xff]
        %v197 = vld [vmem:[%s172 + $0x94] sm:$0xff]
        %v198 = vld [vmem:[%s172 + $0x9c] sm:$0xff]
        %v199 = vld [vmem:[%s172 + $0xa4] sm:$0xf]
        %v200 = vld [vmem:[%s172 + $0xa8] sm:$0xff]
        %v201 = vld [vmem:[%s172 + $0xb0] sm:$0xff]
        %v202 = vld [vmem:[%s172 + $0xb8] sm:$0xff]
        %v203 = vld [vmem:[%s172 + $0xc0] sm:$0xf]
        %v204 = vld [vmem:[%s172 + $0xc4] sm:$0xff]
        %v205 = vld [vmem:[%s172 + $0xcc] sm:$0xff]
        %v206 = vld [vmem:[%s172 + $0xd4] sm:$0xff]
        %v207 = vld [vmem:[%s172 + $0xdc] sm:$0xf]
        %v208 = vld [vmem:[%s172 + $0xe0] sm:$0xff]
        %v209 = vld [vmem:[%s172 + $0xe8] sm:$0xff]
        %v210 = vld [vmem:[%s172 + $0xf0] sm:$0xff]
        %v211 = vld [vmem:[%s172 + $0xf8] sm:$0xf]
        %v212 = vld [vmem:[%s172 + $0xfc] sm:$0xff]
        %v213 = vld [vmem:[%s172 + $0x104] sm:$0xff]
        %v214 = vld [vmem:[%s172 + $0x10c] sm:$0xff]
        %v215 = vld [vmem:[%s172 + $0x114] sm:$0xf]
        %v216 = vld [vmem:[%s172 + $0x118] sm:$0xff]
        %v217 = vld [vmem:[%s172 + $0x120] sm:$0xff]
        %v218 = vld [vmem:[%s172 + $0x128] sm:$0xff]
        %v219 = vld [vmem:[%s172 + $0x130] sm:$0xf]
        %v220 = vld [vmem:[%s172 + $0x134] sm:$0xff]
        %v221 = vld [vmem:[%s172 + $0x13c] sm:$0xff]
        %v222 = vld [vmem:[%s172 + $0x144] sm:$0xff]
        %v223 = vld [vmem:[%s172 + $0x14c] sm:$0xf]
        %v224 = vld [vmem:[%s172 + $0x150] sm:$0xff]
        %v225 = vld [vmem:[%s172 + $0x158] sm:$0xff]
        %v226 = vld [vmem:[%s172 + $0x160] sm:$0xff]
        %v227 = vld [vmem:[%s172 + $0x168] sm:$0xf]
        %v228 = vld [vmem:[%s172 + $0x16c] sm:$0xff]
        %v229 = vld [vmem:[%s172 + $0x174] sm:$0xff]
        %v230 = vld [vmem:[%s172 + $0x17c] sm:$0xff]
        %v231 = vld [vmem:[%s172 + $0x184] sm:$0xf]
        %v232 = vld [vmem:[%s172 + $0x188] sm:$0xff]
        %v233 = vld [vmem:[%s172 + $0x190] sm:$0xff]
        %v234 = vld [vmem:[%s172 + $0x198] sm:$0xff]
        %v235 = vld [vmem:[%s172 + $0x1a0] sm:$0xf]
        %v236 = vld [vmem:[%s172 + $0x1a4] sm:$0xff]
        %v237 = vld [vmem:[%s172 + $0x1ac] sm:$0xff]
        %v238 = vld [vmem:[%s172 + $0x1b4] sm:$0xff]
        %v239 = vld [vmem:[%s172 + $0x1bc] sm:$0xf]
        %v240 = vld [vmem:[%s1] sm:$0xf]
        %v241 = vld [vmem:[%s1 + $0x4] sm:$0xf]
        %v242 = vld [vmem:[%s1 + $0x8] sm:$0xf]
        %v243 = vld [vmem:[%s1 + $0xc] sm:$0xf]
        %v244 = vld [vmem:[%s1 + $0x10] sm:$0xf]
        %v245 = vld [vmem:[%s1 + $0x14] sm:$0xf]
        %v246 = vld [vmem:[%s1 + $0x18] sm:$0xf]
        %v247 = vld [vmem:[%s1 + $0x1c] sm:$0xf]
        %v248 = vld [vmem:[%s1 + $0x20] sm:$0xf]
        %v249 = vld [vmem:[%s1 + $0x24] sm:$0xf]
        %v250 = vld [vmem:[%s1 + $0x28] sm:$0xf]
        %v251 = vld [vmem:[%s1 + $0x2c] sm:$0xf]
        %v252 = vld [vmem:[%s1 + $0x30] sm:$0xf]
        %v253 = vld [vmem:[%s1 + $0x34] sm:$0xf]
        %v254 = vld [vmem:[%s1 + $0x38] sm:$0xf]
        %v255 = vld [vmem:[%s1 + $0x3c] sm:$0xf]
        %v256 = vld [vmem:[%s1 + $0x40] sm:$0xf]
        %v257 = vld [vmem:[%s1 + $0x44] sm:$0xf]
        %v258 = vld [vmem:[%s1 + $0x48] sm:$0xf]
        %v259 = vld [vmem:[%s1 + $0x4c] sm:$0xf]
        %v260 = vld [vmem:[%s1 + $0x50] sm:$0xf]
        %v261 = vld [vmem:[%s1 + $0x54] sm:$0xf]
        %v262 = vld [vmem:[%s1 + $0x58] sm:$0xf]
        %v263 = vld [vmem:[%s1 + $0x5c] sm:$0xf]
        %v264 = vld [vmem:[%s1 + $0x60] sm:$0xf]
        %v265 = vld [vmem:[%s1 + $0x64] sm:$0xf]
        %v266 = vld [vmem:[%s1 + $0x68] sm:$0xf]
        %v267 = vld [vmem:[%s1 + $0x6c] sm:$0xf]
        %v268 = vld [vmem:[%s1 + $0x70] sm:$0xf]
        %v269 = vld [vmem:[%s1 + $0x74] sm:$0xf]
        %v270 = vld [vmem:[%s1 + $0x78] sm:$0xf]
        %v271 = vld [vmem:[%s1 + $0x7c] sm:$0xf]
        %v272 = vld [vmem:[%s1 + $0x80] sm:$0xf]
        %v273 = vld [vmem:[%s1 + $0x84] sm:$0xf]
        %v274 = vld [vmem:[%s1 + $0x88] sm:$0xf]
        %v275 = vld [vmem:[%s1 + $0x8c] sm:$0xf]
        %v276 = vld [vmem:[%s1 + $0x90] sm:$0xf]
        %v277 = vld [vmem:[%s1 + $0x94] sm:$0xf]
        %v278 = vld [vmem:[%s1 + $0x98] sm:$0xf]
        %v279 = vld [vmem:[%s1 + $0x9c] sm:$0xf]
        %v280 = vld [vmem:[%s1 + $0xa0] sm:$0xf]
        %v281 = vld [vmem:[%s1 + $0xa4] sm:$0xf]
        %v282 = vld [vmem:[%s1 + $0xa8] sm:$0xf]
        %v283 = vld [vmem:[%s1 + $0xac] sm:$0xf]
        %v284 = vld [vmem:[%s1 + $0xb0] sm:$0xf]
        %v285 = vld [vmem:[%s1 + $0xb4] sm:$0xf]
        %v286 = vld [vmem:[%s1 + $0xb8] sm:$0xf]
        %v287 = vld [vmem:[%s1 + $0xbc] sm:$0xf]
        %v288 = vld [vmem:[%s1 + $0xc0] sm:$0xf]
        %v289 = vld [vmem:[%s1 + $0xc4] sm:$0xf]
        %v290 = vld [vmem:[%s1 + $0xc8] sm:$0xf]
        %v291 = vld [vmem:[%s1 + $0xcc] sm:$0xf]
        %v292 = vld [vmem:[%s1 + $0xd0] sm:$0xf]
        %v293 = vld [vmem:[%s1 + $0xd4] sm:$0xf]
        %v294 = vld [vmem:[%s1 + $0xd8] sm:$0xf]
        %v295 = vld [vmem:[%s1 + $0xdc] sm:$0xf]
        %v296 = vld [vmem:[%s1 + $0xe0] sm:$0xf]
        %v297 = vld [vmem:[%s1 + $0xe4] sm:$0xf]
        %v298 = vld [vmem:[%s1 + $0xe8] sm:$0xf]
        %v299 = vld [vmem:[%s1 + $0xec] sm:$0xf]
        %v300 = vld [vmem:[%s1 + $0xf0] sm:$0xf]
        %v301 = vld [vmem:[%s1 + $0xf4] sm:$0xf]
        %v302 = vld [vmem:[%s1 + $0xf8] sm:$0xf]
        %v303 = vld [vmem:[%s1 + $0xfc] sm:$0xf]
        %v304 = vld [vmem:[%s1 + $0x100] sm:$0xf]
        %v305 = vld [vmem:[%s1 + $0x104] sm:$0xf]
        %v306 = vld [vmem:[%s1 + $0x108] sm:$0xf]
        %v307 = vld [vmem:[%s1 + $0x10c] sm:$0xf]
        %v308 = vld [vmem:[%s1 + $0x110] sm:$0xf]
        %v309 = vld [vmem:[%s1 + $0x114] sm:$0xf]
        %v310 = vld [vmem:[%s1 + $0x118] sm:$0xf]
        %v311 = vld [vmem:[%s1 + $0x11c] sm:$0xf]
        %v312 = vld [vmem:[%s1 + $0x120] sm:$0xf]
        %v313 = vld [vmem:[%s1 + $0x124] sm:$0xf]
        %v314 = vld [vmem:[%s1 + $0x128] sm:$0xf]
        %v315 = vld [vmem:[%s1 + $0x12c] sm:$0xf]
        %v316 = vld [vmem:[%s1 + $0x130] sm:$0xf]
        %v317 = vld [vmem:[%s1 + $0x134] sm:$0xf]
        %v318 = vld [vmem:[%s1 + $0x138] sm:$0xf]
        %v319 = vld [vmem:[%s1 + $0x13c] sm:$0xf]
        %v320 = vld [vmem:[%s1 + $0x140] sm:$0xf]
        %v321 = vld [vmem:[%s1 + $0x144] sm:$0xf]
        %v322 = vld [vmem:[%s1 + $0x148] sm:$0xf]
        %v323 = vld [vmem:[%s1 + $0x14c] sm:$0xf]
        %v324 = vld [vmem:[%s1 + $0x150] sm:$0xf]
        %v325 = vld [vmem:[%s1 + $0x154] sm:$0xf]
        %v326 = vld [vmem:[%s1 + $0x158] sm:$0xf]
        %v327 = vld [vmem:[%s1 + $0x15c] sm:$0xf]
        %v328 = vld [vmem:[%s1 + $0x160] sm:$0xf]
        %v329 = vld [vmem:[%s1 + $0x164] sm:$0xf]
        %v330 = vld [vmem:[%s1 + $0x168] sm:$0xf]
        %v331 = vld [vmem:[%s1 + $0x16c] sm:$0xf]
        %v332 = vld [vmem:[%s1 + $0x170] sm:$0xf]
        %v333 = vld [vmem:[%s1 + $0x174] sm:$0xf]
        %v334 = vld [vmem:[%s1 + $0x178] sm:$0xf]
        %v335 = vld [vmem:[%s1 + $0x17c] sm:$0xf]
        %v336 = vld [vmem:[%s1 + $0x180] sm:$0xf]
        %v337 = vld [vmem:[%s1 + $0x184] sm:$0xf]
        %v338 = vld [vmem:[%s1 + $0x188] sm:$0xf]
        %v339 = vld [vmem:[%s1 + $0x18c] sm:$0xf]
        %v340 = vld [vmem:[%s1 + $0x190] sm:$0xf]
        %v341 = vld [vmem:[%s1 + $0x194] sm:$0xf]
        %v342 = vld [vmem:[%s1 + $0x198] sm:$0xf]
        %v343 = vld [vmem:[%s1 + $0x19c] sm:$0xf]
        %v344 = vld [vmem:[%s1 + $0x1a0] sm:$0xf]
        %v345 = vld [vmem:[%s1 + $0x1a4] sm:$0xf]
        %v346 = vld [vmem:[%s1 + $0x1a8] sm:$0xf]
        %v347 = vld [vmem:[%s1 + $0x1ac] sm:$0xf]
        %v348 = vld [vmem:[%s2] sm:$0x1]
        %v350 = vperm.slane %v348, 0
        %v416 = vunpack.c.l.b16 %v176
        %v417 = vunpack.c.h.b16 %v176
        %v418 = vunpack.c.l.b16 %v177
        %v419 = vunpack.c.h.b16 %v177
        %v420 = vunpack.c.l.b16 %v178
        %v421 = vunpack.c.h.b16 %v178
        %v422 = vunpack.c.l.b16 %v179
        %v423 = vunpack.c.l.b16 %v180
        %v424 = vunpack.c.h.b16 %v180
        %v425 = vunpack.c.l.b16 %v181
        %v426 = vunpack.c.h.b16 %v181
        %v427 = vunpack.c.l.b16 %v182
        %v428 = vunpack.c.h.b16 %v182
        %v429 = vunpack.c.l.b16 %v183
        %v430 = vunpack.c.l.b16 %v184
        %v431 = vunpack.c.h.b16 %v184
        %v432 = vunpack.c.l.b16 %v185
        %v433 = vunpack.c.h.b16 %v185
        %v434 = vunpack.c.l.b16 %v186
        %v435 = vunpack.c.h.b16 %v186
        %v436 = vunpack.c.l.b16 %v187
        %v437 = vunpack.c.l.b16 %v188
        %v438 = vunpack.c.h.b16 %v188
        %v439 = vunpack.c.l.b16 %v189
        %v440 = vunpack.c.h.b16 %v189
        %v441 = vunpack.c.l.b16 %v190
        %v442 = vunpack.c.h.b16 %v190
        %v443 = vunpack.c.l.b16 %v191
        %v444 = vunpack.c.l.b16 %v192
        %v445 = vunpack.c.h.b16 %v192
        %v446 = vunpack.c.l.b16 %v193
        %v447 = vunpack.c.h.b16 %v193
        %v448 = vunpack.c.l.b16 %v194
        %v449 = vunpack.c.h.b16 %v194
        %v450 = vunpack.c.l.b16 %v195
        %v451 = vunpack.c.l.b16 %v196
        %v452 = vunpack.c.h.b16 %v196
        %v453 = vunpack.c.l.b16 %v197
        %v454 = vunpack.c.h.b16 %v197
        %v455 = vunpack.c.l.b16 %v198
        %v456 = vunpack.c.h.b16 %v198
        %v457 = vunpack.c.l.b16 %v199
        %v458 = vunpack.c.l.b16 %v200
        %v459 = vunpack.c.h.b16 %v200
        %v460 = vunpack.c.l.b16 %v201
        %v461 = vunpack.c.h.b16 %v201
        %v462 = vunpack.c.l.b16 %v202
        %v463 = vunpack.c.h.b16 %v202
        %v464 = vunpack.c.l.b16 %v203
        %v465 = vunpack.c.l.b16 %v204
        %v466 = vunpack.c.h.b16 %v204
        %v467 = vunpack.c.l.b16 %v205
        %v468 = vunpack.c.h.b16 %v205
        %v469 = vunpack.c.l.b16 %v206
        %v470 = vunpack.c.h.b16 %v206
        %v471 = vunpack.c.l.b16 %v207
        %v472 = vunpack.c.l.b16 %v208
        %v473 = vunpack.c.h.b16 %v208
        %v474 = vunpack.c.l.b16 %v209
        %v475 = vunpack.c.h.b16 %v209
        %v476 = vunpack.c.l.b16 %v210
        %v477 = vunpack.c.h.b16 %v210
        %v478 = vunpack.c.l.b16 %v211
        %v479 = vunpack.c.l.b16 %v212
        %v480 = vunpack.c.h.b16 %v212
        %v481 = vunpack.c.l.b16 %v213
        %v482 = vunpack.c.h.b16 %v213
        %v483 = vunpack.c.l.b16 %v214
        %v484 = vunpack.c.h.b16 %v214
        %v485 = vunpack.c.l.b16 %v215
        %v486 = vunpack.c.l.b16 %v216
        %v487 = vunpack.c.h.b16 %v216
        %v488 = vunpack.c.l.b16 %v217
        %v489 = vunpack.c.h.b16 %v217
        %v490 = vunpack.c.l.b16 %v218
        %v491 = vunpack.c.h.b16 %v218
        %v492 = vunpack.c.l.b16 %v219
        %v493 = vunpack.c.l.b16 %v220
        %v494 = vunpack.c.h.b16 %v220
        %v495 = vunpack.c.l.b16 %v221
        %v496 = vunpack.c.h.b16 %v221
        %v497 = vunpack.c.l.b16 %v222
        %v498 = vunpack.c.h.b16 %v222
        %v499 = vunpack.c.l.b16 %v223
        %v500 = vunpack.c.l.b16 %v224
        %v501 = vunpack.c.h.b16 %v224
        %v502 = vunpack.c.l.b16 %v225
        %v503 = vunpack.c.h.b16 %v225
        %v504 = vunpack.c.l.b16 %v226
        %v505 = vunpack.c.h.b16 %v226
        %v506 = vunpack.c.l.b16 %v227
        %v507 = vunpack.c.l.b16 %v228
        %v508 = vunpack.c.h.b16 %v228
        %v509 = vunpack.c.l.b16 %v229
        %v510 = vunpack.c.h.b16 %v229
        %v511 = vunpack.c.l.b16 %v230
        %v512 = vunpack.c.h.b16 %v230
        %v513 = vunpack.c.l.b16 %v231
        %v514 = vunpack.c.l.b16 %v232
        %v515 = vunpack.c.h.b16 %v232
        %v516 = vunpack.c.l.b16 %v233
        %v517 = vunpack.c.h.b16 %v233
        %v518 = vunpack.c.l.b16 %v234
        %v519 = vunpack.c.h.b16 %v234
        %v520 = vunpack.c.l.b16 %v235
        %v521 = vunpack.c.l.b16 %v236
        %v522 = vunpack.c.h.b16 %v236
        %v523 = vunpack.c.l.b16 %v237
        %v524 = vunpack.c.h.b16 %v237
        %v525 = vunpack.c.l.b16 %v238
        %v526 = vunpack.c.h.b16 %v238
        %v527 = vunpack.c.l.b16 %v239
        %v528 = vpack.c.b16 %v423, %v416
        %v529 = vpack.c.b16 %v424, %v417
        %v530 = vpack.c.b16 %v425, %v418
        %v531 = vpack.c.b16 %v426, %v419
        %v532 = vpack.c.b16 %v427, %v420
        %v533 = vpack.c.b16 %v428, %v421
        %v534 = vpack.c.b16 %v429, %v422
        %v535 = vpack.c.b16 %v437, %v430
        %v536 = vpack.c.b16 %v438, %v431
        %v537 = vpack.c.b16 %v439, %v432
        %v538 = vpack.c.b16 %v440, %v433
        %v539 = vpack.c.b16 %v441, %v434
        %v540 = vpack.c.b16 %v442, %v435
        %v541 = vpack.c.b16 %v443, %v436
        %v542 = vpack.c.b16 %v451, %v444
        %v543 = vpack.c.b16 %v452, %v445
        %v544 = vpack.c.b16 %v453, %v446
        %v545 = vpack.c.b16 %v454, %v447
        %v546 = vpack.c.b16 %v455, %v448
        %v547 = vpack.c.b16 %v456, %v449
        %v548 = vpack.c.b16 %v457, %v450
        %v549 = vpack.c.b16 %v465, %v458
        %v550 = vpack.c.b16 %v466, %v459
        %v551 = vpack.c.b16 %v467, %v460
        %v552 = vpack.c.b16 %v468, %v461
        %v553 = vpack.c.b16 %v469, %v462
        %v554 = vpack.c.b16 %v470, %v463
        %v555 = vpack.c.b16 %v471, %v464
        %v556 = vpack.c.b16 %v479, %v472
        %v557 = vpack.c.b16 %v480, %v473
        %v558 = vpack.c.b16 %v481, %v474
        %v559 = vpack.c.b16 %v482, %v475
        %v560 = vpack.c.b16 %v483, %v476
        %v561 = vpack.c.b16 %v484, %v477
        %v562 = vpack.c.b16 %v485, %v478
        %v563 = vpack.c.b16 %v493, %v486
        %v564 = vpack.c.b16 %v494, %v487
        %v565 = vpack.c.b16 %v495, %v488
        %v566 = vpack.c.b16 %v496, %v489
        %v567 = vpack.c.b16 %v497, %v490
        %v568 = vpack.c.b16 %v498, %v491
        %v569 = vpack.c.b16 %v499, %v492
        %v570 = vpack.c.b16 %v507, %v500
        %v571 = vpack.c.b16 %v508, %v501
        %v572 = vpack.c.b16 %v509, %v502
        %v573 = vpack.c.b16 %v510, %v503
        %v574 = vpack.c.b16 %v511, %v504
        %v575 = vpack.c.b16 %v512, %v505
        %v576 = vpack.c.b16 %v513, %v506
        %v577 = vpack.c.b16 %v521, %v514
        %v578 = vpack.c.b16 %v522, %v515
        %v579 = vpack.c.b16 %v523, %v516
        %v580 = vpack.c.b16 %v524, %v517
        %v581 = vpack.c.b16 %v525, %v518
        %v582 = vpack.c.b16 %v526, %v519
        %v583 = vpack.c.b16 %v527, %v520
        %v740 = vunpack.c.l.b16 %v240
        %v741 = vunpack.c.l.b16 %v241
        %v742 = vunpack.c.l.b16 %v242
        %v743 = vunpack.c.l.b16 %v243
        %v744 = vunpack.c.l.b16 %v244
        %v745 = vunpack.c.l.b16 %v245
        %v746 = vunpack.c.l.b16 %v246
        %v747 = vunpack.c.l.b16 %v247
        %v748 = vunpack.c.l.b16 %v248
        %v749 = vunpack.c.l.b16 %v249
        %v750 = vunpack.c.l.b16 %v250
        %v751 = vunpack.c.l.b16 %v251
        %v752 = vunpack.c.l.b16 %v252
        %v753 = vunpack.c.l.b16 %v253
        %v754 = vunpack.c.l.b16 %v254
        %v755 = vunpack.c.l.b16 %v255
        %v756 = vunpack.c.l.b16 %v256
        %v757 = vunpack.c.l.b16 %v257
        %v758 = vunpack.c.l.b16 %v258
        %v759 = vunpack.c.l.b16 %v259
        %v760 = vunpack.c.l.b16 %v260
        %v761 = vunpack.c.l.b16 %v261
        %v762 = vunpack.c.l.b16 %v262
        %v763 = vunpack.c.l.b16 %v263
        %v764 = vunpack.c.l.b16 %v264
        %v765 = vunpack.c.l.b16 %v265
        %v766 = vunpack.c.l.b16 %v266
        %v767 = vunpack.c.l.b16 %v267
        %v768 = vunpack.c.l.b16 %v268
        %v769 = vunpack.c.l.b16 %v269
        %v770 = vunpack.c.l.b16 %v270
        %v771 = vunpack.c.l.b16 %v271
        %v772 = vunpack.c.l.b16 %v272
        %v773 = vunpack.c.l.b16 %v273
        %v774 = vunpack.c.l.b16 %v274
        %v775 = vunpack.c.l.b16 %v275
        %v776 = vunpack.c.l.b16 %v276
        %v777 = vunpack.c.l.b16 %v277
        %v778 = vunpack.c.l.b16 %v278
        %v779 = vunpack.c.l.b16 %v279
        %v780 = vunpack.c.l.b16 %v280
        %v781 = vunpack.c.l.b16 %v281
        %v782 = vunpack.c.l.b16 %v282
        %v783 = vunpack.c.l.b16 %v283
        %v784 = vunpack.c.l.b16 %v284
        %v785 = vunpack.c.l.b16 %v285
        %v786 = vunpack.c.l.b16 %v286
        %v787 = vunpack.c.l.b16 %v287
        %v788 = vunpack.c.l.b16 %v288
        %v789 = vunpack.c.l.b16 %v289
        %v790 = vunpack.c.l.b16 %v290
        %v791 = vunpack.c.l.b16 %v291
        %v792 = vunpack.c.l.b16 %v292
        %v793 = vunpack.c.l.b16 %v293
        %v794 = vunpack.c.l.b16 %v294
        %v795 = vunpack.c.l.b16 %v295
        %v796 = vunpack.c.l.b16 %v296
        %v797 = vunpack.c.l.b16 %v297
        %v798 = vunpack.c.l.b16 %v298
        %v799 = vunpack.c.l.b16 %v299
        %v800 = vunpack.c.l.b16 %v300
        %v801 = vunpack.c.l.b16 %v301
        %v802 = vunpack.c.l.b16 %v302
        %v803 = vunpack.c.l.b16 %v303
        %v804 = vunpack.c.l.b16 %v304
        %v805 = vunpack.c.l.b16 %v305
        %v806 = vunpack.c.l.b16 %v306
        %v807 = vunpack.c.l.b16 %v307
        %v808 = vunpack.c.l.b16 %v308
        %v809 = vunpack.c.l.b16 %v309
        %v810 = vunpack.c.l.b16 %v310
        %v811 = vunpack.c.l.b16 %v311
        %v812 = vunpack.c.l.b16 %v312
        %v813 = vunpack.c.l.b16 %v313
        %v814 = vunpack.c.l.b16 %v314
        %v815 = vunpack.c.l.b16 %v315
        %v816 = vunpack.c.l.b16 %v316
        %v817 = vunpack.c.l.b16 %v317
        %v818 = vunpack.c.l.b16 %v318
        %v819 = vunpack.c.l.b16 %v319
        %v820 = vunpack.c.l.b16 %v320
        %v821 = vunpack.c.l.b16 %v321
        %v822 = vunpack.c.l.b16 %v322
        %v823 = vunpack.c.l.b16 %v323
        %v824 = vunpack.c.l.b16 %v324
        %v825 = vunpack.c.l.b16 %v325
        %v826 = vunpack.c.l.b16 %v326
        %v827 = vunpack.c.l.b16 %v327
        %v828 = vunpack.c.l.b16 %v328
        %v829 = vunpack.c.l.b16 %v329
        %v830 = vunpack.c.l.b16 %v330
        %v831 = vunpack.c.l.b16 %v331
        %v832 = vunpack.c.l.b16 %v332
        %v833 = vunpack.c.l.b16 %v333
        %v834 = vunpack.c.l.b16 %v334
        %v835 = vunpack.c.l.b16 %v335
        %v836 = vunpack.c.l.b16 %v336
        %v837 = vunpack.c.l.b16 %v337
        %v838 = vunpack.c.l.b16 %v338
        %v839 = vunpack.c.l.b16 %v339
        %v840 = vunpack.c.l.b16 %v340
        %v841 = vunpack.c.l.b16 %v341
        %v842 = vunpack.c.l.b16 %v342
        %v843 = vunpack.c.l.b16 %v343
        %v844 = vunpack.c.l.b16 %v344
        %v845 = vunpack.c.l.b16 %v345
        %v846 = vunpack.c.l.b16 %v346
        %v847 = vunpack.c.l.b16 %v347
        %v848 = vpack.c.b16 %v741, %v740
        %v849 = vpack.c.b16 %v743, %v742
        %v850 = vpack.c.b16 %v745, %v744
        %v851 = vpack.c.b16 %v747, %v746
        %v852 = vpack.c.b16 %v749, %v748
        %v853 = vpack.c.b16 %v751, %v750
        %v854 = vpack.c.b16 %v753, %v752
        %v855 = vpack.c.b16 %v755, %v754
        %v856 = vpack.c.b16 %v757, %v756
        %v857 = vpack.c.b16 %v759, %v758
        %v858 = vpack.c.b16 %v761, %v760
        %v859 = vpack.c.b16 %v763, %v762
        %v860 = vpack.c.b16 %v765, %v764
        %v861 = vpack.c.b16 %v767, %v766
        %v862 = vpack.c.b16 %v769, %v768
        %v863 = vpack.c.b16 %v771, %v770
        %v864 = vpack.c.b16 %v773, %v772
        %v865 = vpack.c.b16 %v775, %v774
        %v866 = vpack.c.b16 %v777, %v776
        %v867 = vpack.c.b16 %v779, %v778
        %v868 = vpack.c.b16 %v781, %v780
        %v869 = vpack.c.b16 %v783, %v782
        %v870 = vpack.c.b16 %v785, %v784
        %v871 = vpack.c.b16 %v787, %v786
        %v872 = vpack.c.b16 %v789, %v788
        %v873 = vpack.c.b16 %v791, %v790
        %v874 = vpack.c.b16 %v793, %v792
        %v875 = vpack.c.b16 %v795, %v794
        %v876 = vpack.c.b16 %v797, %v796
        %v877 = vpack.c.b16 %v799, %v798
        %v878 = vpack.c.b16 %v801, %v800
        %v879 = vpack.c.b16 %v803, %v802
        %v880 = vpack.c.b16 %v805, %v804
        %v881 = vpack.c.b16 %v807, %v806
        %v882 = vpack.c.b16 %v809, %v808
        %v883 = vpack.c.b16 %v811, %v810
        %v884 = vpack.c.b16 %v813, %v812
        %v885 = vpack.c.b16 %v815, %v814
        %v886 = vpack.c.b16 %v817, %v816
        %v887 = vpack.c.b16 %v819, %v818
        %v888 = vpack.c.b16 %v821, %v820
        %v889 = vpack.c.b16 %v823, %v822
        %v890 = vpack.c.b16 %v825, %v824
        %v891 = vpack.c.b16 %v827, %v826
        %v892 = vpack.c.b16 %v829, %v828
        %v893 = vpack.c.b16 %v831, %v830
        %v894 = vpack.c.b16 %v833, %v832
        %v895 = vpack.c.b16 %v835, %v834
        %v896 = vpack.c.b16 %v837, %v836
        %v897 = vpack.c.b16 %v839, %v838
        %v898 = vpack.c.b16 %v841, %v840
        %v899 = vpack.c.b16 %v843, %v842
        %v900 = vpack.c.b16 %v845, %v844
        %v901 = vpack.c.b16 %v847, %v846
        %vm956 = vcmask 785408
        %v958 = vsel %vm956, %v534, 0
        %v961 = vsel %vm956, %v541, 0
        %v964 = vsel %vm956, %v548, 0
        %v967 = vsel %vm956, %v555, 0
        %v970 = vsel %vm956, %v562, 0
        %v973 = vsel %vm956, %v569, 0
        %v976 = vsel %vm956, %v576, 0
        %v979 = vsel %vm956, %v583, 0
        %981 = vmatpush.bf16.msra.mxu0 %v855
        %982 = vmatpush.bf16.msra.mxu0 %v854
        %983 = vmatpush.bf16.msra.mxu0 %v853
        %984 = vmatpush.bf16.msra.mxu0 %v852
        %985 = vmatpush.bf16.msra.mxu0 %v851
        %986 = vmatpush.bf16.msra.mxu0 %v850
        %987 = vmatpush.bf16.msra.mxu0 %v849
        %988 = vmatpush.bf16.msra.mxu0 %v848
        %989 = vmatmul.bf16.gmra.mxu0 %v528
        %v990 = vpop.f32.mrf.mxu0
        %v991 = vadd.f32 %v350, %v990
        %v992 = vpop.f32.mrf.mxu0
        %v993 = vadd.f32 %v350, %v992
        %994 = vmatmul.bf16.gmra.mxu0 %v535
        %v995 = vpop.f32.mrf.mxu0
        %v996 = vadd.f32 %v350, %v995
        %v997 = vpop.f32.mrf.mxu0
        %v998 = vadd.f32 %v350, %v997
        %999 = vmatmul.bf16.gmra.mxu0 %v542
        %v1000 = vpop.f32.mrf.mxu0
        %v1001 = vadd.f32 %v350, %v1000
        %v1002 = vpop.f32.mrf.mxu0
        %v1003 = vadd.f32 %v350, %v1002
        %1004 = vmatmul.bf16.gmra.mxu0 %v549
        %v1005 = vpop.f32.mrf.mxu0
        %v1006 = vadd.f32 %v350, %v1005
        %v1007 = vpop.f32.mrf.mxu0
        %v1008 = vadd.f32 %v350, %v1007
        %1009 = vmatmul.bf16.gmra.mxu0 %v556
        %v1010 = vpop.f32.mrf.mxu0
        %v1011 = vadd.f32 %v350, %v1010
        %v1012 = vpop.f32.mrf.mxu0
        %v1013 = vadd.f32 %v350, %v1012
        %1014 = vmatmul.bf16.gmra.mxu0 %v563
        %v1015 = vpop.f32.mrf.mxu0
        %v1016 = vadd.f32 %v350, %v1015
        %v1017 = vpop.f32.mrf.mxu0
        %v1018 = vadd.f32 %v350, %v1017
        %1019 = vmatmul.bf16.gmra.mxu0 %v570
        %v1020 = vpop.f32.mrf.mxu0
        %v1021 = vadd.f32 %v350, %v1020
        %v1022 = vpop.f32.mrf.mxu0
        %v1023 = vadd.f32 %v350, %v1022
        %1024 = vmatmul.bf16.gmra.mxu0 %v577
        %v1025 = vpop.f32.mrf.mxu0
        %v1026 = vadd.f32 %v350, %v1025
        %v1027 = vpop.f32.mrf.mxu0
        %v1028 = vadd.f32 %v350, %v1027
        %1029 = vdwg.mxu0
        %1030 = vmatpush.bf16.msra.mxu0 %v863
        %1031 = vmatpush.bf16.msra.mxu0 %v862
        %1032 = vmatpush.bf16.msra.mxu0 %v861
        %1033 = vmatpush.bf16.msra.mxu0 %v860
        %1034 = vmatpush.bf16.msra.mxu0 %v859
        %1035 = vmatpush.bf16.msra.mxu0 %v858
        %1036 = vmatpush.bf16.msra.mxu0 %v857
        %1037 = vmatpush.bf16.msra.mxu0 %v856
        %1038 = vmatmul.bf16.gmra.mxu0 %v529
        %v1039 = vpop.f32.mrf.mxu0
        %v1040 = vadd.f32 %v991, %v1039
        %v1041 = vpop.f32.mrf.mxu0
        %v1042 = vadd.f32 %v993, %v1041
        %1043 = vmatmul.bf16.gmra.mxu0 %v536
        %v1044 = vpop.f32.mrf.mxu0
        %v1045 = vadd.f32 %v996, %v1044
        %v1046 = vpop.f32.mrf.mxu0
        %v1047 = vadd.f32 %v998, %v1046
        %1048 = vmatmul.bf16.gmra.mxu0 %v543
        %v1049 = vpop.f32.mrf.mxu0
        %v1050 = vadd.f32 %v1001, %v1049
        %v1051 = vpop.f32.mrf.mxu0
        %v1052 = vadd.f32 %v1003, %v1051
        %1053 = vmatmul.bf16.gmra.mxu0 %v550
        %v1054 = vpop.f32.mrf.mxu0
        %v1055 = vadd.f32 %v1006, %v1054
        %v1056 = vpop.f32.mrf.mxu0
        %v1057 = vadd.f32 %v1008, %v1056
        %1058 = vmatmul.bf16.gmra.mxu0 %v557
        %v1059 = vpop.f32.mrf.mxu0
        %v1060 = vadd.f32 %v1011, %v1059
        %v1061 = vpop.f32.mrf.mxu0
        %v1062 = vadd.f32 %v1013, %v1061
        %1063 = vmatmul.bf16.gmra.mxu0 %v564
        %v1064 = vpop.f32.mrf.mxu0
        %v1065 = vadd.f32 %v1016, %v1064
        %v1066 = vpop.f32.mrf.mxu0
        %v1067 = vadd.f32 %v1018, %v1066
        %1068 = vmatmul.bf16.gmra.mxu0 %v571
        %v1069 = vpop.f32.mrf.mxu0
        %v1070 = vadd.f32 %v1021, %v1069
        %v1071 = vpop.f32.mrf.mxu0
        %v1072 = vadd.f32 %v1023, %v1071
        %1073 = vmatmul.bf16.gmra.mxu0 %v578
        %v1074 = vpop.f32.mrf.mxu0
        %v1075 = vadd.f32 %v1026, %v1074
        %v1076 = vpop.f32.mrf.mxu0
        %v1077 = vadd.f32 %v1028, %v1076
        %1078 = vdwg.mxu0
        %1079 = vmatpush.bf16.msra.mxu0 %v871
        %1080 = vmatpush.bf16.msra.mxu0 %v870
        %1081 = vmatpush.bf16.msra.mxu0 %v869
        %1082 = vmatpush.bf16.msra.mxu0 %v868
        %1083 = vmatpush.bf16.msra.mxu0 %v867
        %1084 = vmatpush.bf16.msra.mxu0 %v866
        %1085 = vmatpush.bf16.msra.mxu0 %v865
        %1086 = vmatpush.bf16.msra.mxu0 %v864
        %1087 = vmatmul.bf16.gmra.mxu0 %v530
        %v1088 = vpop.f32.mrf.mxu0
        %v1089 = vadd.f32 %v1040, %v1088
        %v1090 = vpop.f32.mrf.mxu0
        %v1091 = vadd.f32 %v1042, %v1090
        %1092 = vmatmul.bf16.gmra.mxu0 %v537
        %v1093 = vpop.f32.mrf.mxu0
        %v1094 = vadd.f32 %v1045, %v1093
        %v1095 = vpop.f32.mrf.mxu0
        %v1096 = vadd.f32 %v1047, %v1095
        %1097 = vmatmul.bf16.gmra.mxu0 %v544
        %v1098 = vpop.f32.mrf.mxu0
        %v1099 = vadd.f32 %v1050, %v1098
        %v1100 = vpop.f32.mrf.mxu0
        %v1101 = vadd.f32 %v1052, %v1100
        %1102 = vmatmul.bf16.gmra.mxu0 %v551
        %v1103 = vpop.f32.mrf.mxu0
        %v1104 = vadd.f32 %v1055, %v1103
        %v1105 = vpop.f32.mrf.mxu0
        %v1106 = vadd.f32 %v1057, %v1105
        %1107 = vmatmul.bf16.gmra.mxu0 %v558
        %v1108 = vpop.f32.mrf.mxu0
        %v1109 = vadd.f32 %v1060, %v1108
        %v1110 = vpop.f32.mrf.mxu0
        %v1111 = vadd.f32 %v1062, %v1110
        %1112 = vmatmul.bf16.gmra.mxu0 %v565
        %v1113 = vpop.f32.mrf.mxu0
        %v1114 = vadd.f32 %v1065, %v1113
        %v1115 = vpop.f32.mrf.mxu0
        %v1116 = vadd.f32 %v1067, %v1115
        %1117 = vmatmul.bf16.gmra.mxu0 %v572
        %v1118 = vpop.f32.mrf.mxu0
        %v1119 = vadd.f32 %v1070, %v1118
        %v1120 = vpop.f32.mrf.mxu0
        %v1121 = vadd.f32 %v1072, %v1120
        %1122 = vmatmul.bf16.gmra.mxu0 %v579
        %v1123 = vpop.f32.mrf.mxu0
        %v1124 = vadd.f32 %v1075, %v1123
        %v1125 = vpop.f32.mrf.mxu0
        %v1126 = vadd.f32 %v1077, %v1125
        %1127 = vdwg.mxu0
        %1128 = vmatpush.bf16.msra.mxu0 %v879
        %1129 = vmatpush.bf16.msra.mxu0 %v878
        %1130 = vmatpush.bf16.msra.mxu0 %v877
        %1131 = vmatpush.bf16.msra.mxu0 %v876
        %1132 = vmatpush.bf16.msra.mxu0 %v875
        %1133 = vmatpush.bf16.msra.mxu0 %v874
        %1134 = vmatpush.bf16.msra.mxu0 %v873
        %1135 = vmatpush.bf16.msra.mxu0 %v872
        %1136 = vmatmul.bf16.gmra.mxu0 %v531
        %v1137 = vpop.f32.mrf.mxu0
        %v1138 = vadd.f32 %v1089, %v1137
        %v1139 = vpop.f32.mrf.mxu0
        %v1140 = vadd.f32 %v1091, %v1139
        %1141 = vmatmul.bf16.gmra.mxu0 %v538
        %v1142 = vpop.f32.mrf.mxu0
        %v1143 = vadd.f32 %v1094, %v1142
        %v1144 = vpop.f32.mrf.mxu0
        %v1145 = vadd.f32 %v1096, %v1144
        %1146 = vmatmul.bf16.gmra.mxu0 %v545
        %v1147 = vpop.f32.mrf.mxu0
        %v1148 = vadd.f32 %v1099, %v1147
        %v1149 = vpop.f32.mrf.mxu0
        %v1150 = vadd.f32 %v1101, %v1149
        %1151 = vmatmul.bf16.gmra.mxu0 %v552
        %v1152 = vpop.f32.mrf.mxu0
        %v1153 = vadd.f32 %v1104, %v1152
        %v1154 = vpop.f32.mrf.mxu0
        %v1155 = vadd.f32 %v1106, %v1154
        %1156 = vmatmul.bf16.gmra.mxu0 %v559
        %v1157 = vpop.f32.mrf.mxu0
        %v1158 = vadd.f32 %v1109, %v1157
        %v1159 = vpop.f32.mrf.mxu0
        %v1160 = vadd.f32 %v1111, %v1159
        %1161 = vmatmul.bf16.gmra.mxu0 %v566
        %v1162 = vpop.f32.mrf.mxu0
        %v1163 = vadd.f32 %v1114, %v1162
        %v1164 = vpop.f32.mrf.mxu0
        %v1165 = vadd.f32 %v1116, %v1164
        %1166 = vmatmul.bf16.gmra.mxu0 %v573
        %v1167 = vpop.f32.mrf.mxu0
        %v1168 = vadd.f32 %v1119, %v1167
        %v1169 = vpop.f32.mrf.mxu0
        %v1170 = vadd.f32 %v1121, %v1169
        %1171 = vmatmul.bf16.gmra.mxu0 %v580
        %v1172 = vpop.f32.mrf.mxu0
        %v1173 = vadd.f32 %v1124, %v1172
        %v1174 = vpop.f32.mrf.mxu0
        %v1175 = vadd.f32 %v1126, %v1174
        %1176 = vdwg.mxu0
        %1177 = vmatpush.bf16.msra.mxu0 %v887
        %1178 = vmatpush.bf16.msra.mxu0 %v886
        %1179 = vmatpush.bf16.msra.mxu0 %v885
        %1180 = vmatpush.bf16.msra.mxu0 %v884
        %1181 = vmatpush.bf16.msra.mxu0 %v883
        %1182 = vmatpush.bf16.msra.mxu0 %v882
        %1183 = vmatpush.bf16.msra.mxu0 %v881
        %1184 = vmatpush.bf16.msra.mxu0 %v880
        %1185 = vmatmul.bf16.gmra.mxu0 %v532
        %v1186 = vpop.f32.mrf.mxu0
        %v1187 = vadd.f32 %v1138, %v1186
        %v1188 = vpop.f32.mrf.mxu0
        %v1189 = vadd.f32 %v1140, %v1188
        %1190 = vmatmul.bf16.gmra.mxu0 %v539
        %v1191 = vpop.f32.mrf.mxu0
        %v1192 = vadd.f32 %v1143, %v1191
        %v1193 = vpop.f32.mrf.mxu0
        %v1194 = vadd.f32 %v1145, %v1193
        %1195 = vmatmul.bf16.gmra.mxu0 %v546
        %v1196 = vpop.f32.mrf.mxu0
        %v1197 = vadd.f32 %v1148, %v1196
        %v1198 = vpop.f32.mrf.mxu0
        %v1199 = vadd.f32 %v1150, %v1198
        %1200 = vmatmul.bf16.gmra.mxu0 %v553
        %v1201 = vpop.f32.mrf.mxu0
        %v1202 = vadd.f32 %v1153, %v1201
        %v1203 = vpop.f32.mrf.mxu0
        %v1204 = vadd.f32 %v1155, %v1203
        %1205 = vmatmul.bf16.gmra.mxu0 %v560
        %v1206 = vpop.f32.mrf.mxu0
        %v1207 = vadd.f32 %v1158, %v1206
        %v1208 = vpop.f32.mrf.mxu0
        %v1209 = vadd.f32 %v1160, %v1208
        %1210 = vmatmul.bf16.gmra.mxu0 %v567
        %v1211 = vpop.f32.mrf.mxu0
        %v1212 = vadd.f32 %v1163, %v1211
        %v1213 = vpop.f32.mrf.mxu0
        %v1214 = vadd.f32 %v1165, %v1213
        %1215 = vmatmul.bf16.gmra.mxu0 %v574
        %v1216 = vpop.f32.mrf.mxu0
        %v1217 = vadd.f32 %v1168, %v1216
        %v1218 = vpop.f32.mrf.mxu0
        %v1219 = vadd.f32 %v1170, %v1218
        %1220 = vmatmul.bf16.gmra.mxu0 %v581
        %v1221 = vpop.f32.mrf.mxu0
        %v1222 = vadd.f32 %v1173, %v1221
        %v1223 = vpop.f32.mrf.mxu0
        %v1224 = vadd.f32 %v1175, %v1223
        %1225 = vdwg.mxu0
        %1226 = vmatpush.bf16.msra.mxu0 %v895
        %1227 = vmatpush.bf16.msra.mxu0 %v894
        %1228 = vmatpush.bf16.msra.mxu0 %v893
        %1229 = vmatpush.bf16.msra.mxu0 %v892
        %1230 = vmatpush.bf16.msra.mxu0 %v891
        %1231 = vmatpush.bf16.msra.mxu0 %v890
        %1232 = vmatpush.bf16.msra.mxu0 %v889
        %1233 = vmatpush.bf16.msra.mxu0 %v888
        %1234 = vmatmul.bf16.gmra.mxu0 %v533
        %v1235 = vpop.f32.mrf.mxu0
        %v1236 = vadd.f32 %v1187, %v1235
        %v1237 = vpop.f32.mrf.mxu0
        %v1238 = vadd.f32 %v1189, %v1237
        %1239 = vmatmul.bf16.gmra.mxu0 %v540
        %v1240 = vpop.f32.mrf.mxu0
        %v1241 = vadd.f32 %v1192, %v1240
        %v1242 = vpop.f32.mrf.mxu0
        %v1243 = vadd.f32 %v1194, %v1242
        %1244 = vmatmul.bf16.gmra.mxu0 %v547
        %v1245 = vpop.f32.mrf.mxu0
        %v1246 = vadd.f32 %v1197, %v1245
        %v1247 = vpop.f32.mrf.mxu0
        %v1248 = vadd.f32 %v1199, %v1247
        %1249 = vmatmul.bf16.gmra.mxu0 %v554
        %v1250 = vpop.f32.mrf.mxu0
        %v1251 = vadd.f32 %v1202, %v1250
        %v1252 = vpop.f32.mrf.mxu0
        %v1253 = vadd.f32 %v1204, %v1252
        %1254 = vmatmul.bf16.gmra.mxu0 %v561
        %v1255 = vpop.f32.mrf.mxu0
        %v1256 = vadd.f32 %v1207, %v1255
        %v1257 = vpop.f32.mrf.mxu0
        %v1258 = vadd.f32 %v1209, %v1257
        %1259 = vmatmul.bf16.gmra.mxu0 %v568
        %v1260 = vpop.f32.mrf.mxu0
        %v1261 = vadd.f32 %v1212, %v1260
        %v1262 = vpop.f32.mrf.mxu0
        %v1263 = vadd.f32 %v1214, %v1262
        %1264 = vmatmul.bf16.gmra.mxu0 %v575
        %v1265 = vpop.f32.mrf.mxu0
        %v1266 = vadd.f32 %v1217, %v1265
        %v1267 = vpop.f32.mrf.mxu0
        %v1268 = vadd.f32 %v1219, %v1267
        %1269 = vmatmul.bf16.gmra.mxu0 %v582
        %v1270 = vpop.f32.mrf.mxu0
        %v1271 = vadd.f32 %v1222, %v1270
        %v1272 = vpop.f32.mrf.mxu0
        %v1273 = vadd.f32 %v1224, %v1272
        %1274 = vdwg.mxu0
        %1275 = vmatpush.bf16.msra.mxu0 0
        %1276 = vmatpush.bf16.msra.mxu0 0
        %1277 = vmatpush.bf16.msra.mxu0 %v901
        %1278 = vmatpush.bf16.msra.mxu0 %v900
        %1279 = vmatpush.bf16.msra.mxu0 %v899
        %1280 = vmatpush.bf16.msra.mxu0 %v898
        %1281 = vmatpush.bf16.msra.mxu0 %v897
        %1282 = vmatpush.bf16.msra.mxu0 %v896
        %1283 = vmatmul.bf16.gmra.mxu0 %v958
        %v1284 = vpop.f32.mrf.mxu0
        %v1285 = vadd.f32 %v1236, %v1284
        %v1286 = vpop.f32.mrf.mxu0
        %v1287 = vadd.f32 %v1238, %v1286
        %1288 = vmatmul.bf16.gmra.mxu0 %v961
        %v1289 = vpop.f32.mrf.mxu0
        %v1290 = vadd.f32 %v1241, %v1289
        %v1291 = vpop.f32.mrf.mxu0
        %v1292 = vadd.f32 %v1243, %v1291
        %1293 = vmatmul.bf16.gmra.mxu0 %v964
        %v1294 = vpop.f32.mrf.mxu0
        %v1295 = vadd.f32 %v1246, %v1294
        %v1296 = vpop.f32.mrf.mxu0
        %v1297 = vadd.f32 %v1248, %v1296
        %1298 = vmatmul.bf16.gmra.mxu0 %v967
        %v1299 = vpop.f32.mrf.mxu0
        %v1300 = vadd.f32 %v1251, %v1299
        %v1301 = vpop.f32.mrf.mxu0
        %v1302 = vadd.f32 %v1253, %v1301
        %1303 = vmatmul.bf16.gmra.mxu0 %v970
        %v1304 = vpop.f32.mrf.mxu0
        %v1305 = vadd.f32 %v1256, %v1304
        %v1306 = vpop.f32.mrf.mxu0
        %v1307 = vadd.f32 %v1258, %v1306
        %1308 = vmatmul.bf16.gmra.mxu0 %v973
        %v1309 = vpop.f32.mrf.mxu0
        %v1310 = vadd.f32 %v1261, %v1309
        %v1311 = vpop.f32.mrf.mxu0
        %v1312 = vadd.f32 %v1263, %v1311
        %1313 = vmatmul.bf16.gmra.mxu0 %v976
        %v1314 = vpop.f32.mrf.mxu0
        %v1315 = vadd.f32 %v1266, %v1314
        %v1316 = vpop.f32.mrf.mxu0
        %v1317 = vadd.f32 %v1268, %v1316
        %1318 = vmatmul.bf16.gmra.mxu0 %v979
        %v1319 = vpop.f32.mrf.mxu0
        %v1320 = vadd.f32 %v1271, %v1319
        %v1321 = vpop.f32.mrf.mxu0
        %v1322 = vadd.f32 %v1273, %v1321
        %1323 = vdwg.mxu0
        %1324 = vst [vmem:[%s166] sm:$0xff] %v1285
        %1325 = vst [vmem:[%s166 + $0x8] sm:$0xff] %v1287
        %1326 = vst [vmem:[%s166 + $0x10] sm:$0xff] %v1290
        %1327 = vst [vmem:[%s166 + $0x18] sm:$0xff] %v1292
        %1328 = vst [vmem:[%s166 + $0x20] sm:$0xff] %v1295
        %1329 = vst [vmem:[%s166 + $0x28] sm:$0xff] %v1297
        %1330 = vst [vmem:[%s166 + $0x30] sm:$0xff] %v1300
        %1331 = vst [vmem:[%s166 + $0x38] sm:$0xff] %v1302
        %1332 = vst [vmem:[%s166 + $0x40] sm:$0xff] %v1305
        %1333 = vst [vmem:[%s166 + $0x48] sm:$0xff] %v1307
        %1334 = vst [vmem:[%s166 + $0x50] sm:$0xff] %v1310
        %1335 = vst [vmem:[%s166 + $0x58] sm:$0xff] %v1312
        %1336 = vst [vmem:[%s166 + $0x60] sm:$0xff] %v1315
        %1337 = vst [vmem:[%s166 + $0x68] sm:$0xff] %v1317
        %1338 = vst [vmem:[%s166 + $0x70] sm:$0xff] %v1320
        %1339 = vst [vmem:[%s166 + $0x78] sm:$0xff] %v1322
        %s1340 = sand.u32 %s93, 1
        %s1341 = scalar_lea.sflag [#allocation3], %s1340
        %s1342 = sand.u32 %s93, 1
        %s1343 = smul.addr %s1342, 128
        %s1344 = scalar_lea.vmem [#allocation2], %s1343
        // Predicated region
        $region33: #{tpu_custom_call.1} parent=31 // pred_check
          %p1345 = pneg %p103
        $region34: #{tpu_custom_call.1} parent=31 // pred_check_branch
          %1347 = sbr.rel (%p1345) target = $region36
        $region35: #{tpu_custom_call.1} parent=31 // pred_region
          %s1348 = smul.u32 16, %s17
          %1350 = vsyncadd %s1341, 0
          %s1351 = smul.addr %s1348, 8
          %s1352 = scalar_lea.hbm %s3, %s1351
          %s1353 = sshll.u32 %s1344, 4
          %s1354 = int_to_ptr.vmem [resolvable:$true] %s1353
          %s1355 = sshll.u32 %s1352, 4
          %s1356 = int_to_ptr.hbm [resolvable:$true] %s1355
          %1361 = dma.vmem_to_hbm [thread:$0]  %s1354, 2048, %s1356, %s1341, 128, 128, 8
        $region36: #{tpu_custom_call.1} parent=31 // pred_fallthru
          _
      $region32: #{tpu_custom_call.1} parent=5 // pred_fallthru
        _
      %p1362 = scmp.le.s32.totalorder 2, %s12
      // Predicated region
      $region37: #{tpu_custom_call.1} parent=5 // pred_check
        %p1363 = pneg %p1362
      $region38: #{tpu_custom_call.1} parent=5 // pred_check_branch
        %1365 = sbr.rel (%p1363) target = $region40
      $region39: #{tpu_custom_call.1} parent=5 // pred_region
        %s1366 = ssub.s32 %s12, 2
        // Predicated region
        $region41: #{tpu_custom_call.1} parent=39 // pred_check
          %p1367 = pneg %p109
        $region42: #{tpu_custom_call.1} parent=39 // pred_check_branch
          %1369 = sbr.rel (%p1367) target = $region44
        $region43: #{tpu_custom_call.1} parent=39 // pred_region
          %s1370 = sand.u32 %s94, 1
          %s1371 = scalar_lea.sflag [#allocation3], %s1370
          %s1372 = sand.u32 %s94, 1
          %s1373 = smul.addr %s1372, 128
          %s1374 = scalar_lea.vmem [#allocation2], %s1373
          %1376 = dma.done %s1371, 2048
        $region44: #{tpu_custom_call.1} parent=39 // pred_fallthru
          _
      $region40: #{tpu_custom_call.1} parent=5 // pred_fallthru
        _
    $region6: #{tpu_custom_call.1} parent=1 // loop_footer
      %s16 = sadd.s32 1, %s12
    $region7: #{tpu_custom_call.1} parent=1 // loop_footer_branch
      %11 = sbr.rel target = $region3
    $region8: #{tpu_custom_call.1} parent=1 // loop_exit
      _
    %1377 = vsyncpa [#allocation3], 1
    %s1378 = scalar_lea.sflag [#allocation3], 1
    %1379 = vsyncpa %s1378, 1

</llo_original>
